<compile_context>
chip_gen: v7x
topology: tpu7x:2x2x1
jax: 0.10.0
libtpu: 0.0.40
codegen_flags: <defaults>
</compile_context>

<pallas_src>
import functools

import jax
import jax.numpy as jnp
from jax.experimental import pallas as pl
from jax.experimental.pallas import tpu as pltpu

LANE = 128
MAX_ROWS_PER_TILE = 4096  # 4096 x 128 f32 = 2 MiB per tile (4 MiB double-buffered)


def _gan_loss_kernel(x_ref, o_ref, acc_ref, *, target_val, gan_mode, n_valid,
                     rows_per_tile, needs_mask):
    i = pl.program_id(0)

    @pl.when(i == 0)
    def _():
        acc_ref[...] = jnp.zeros_like(acc_ref)

    x = x_ref[...].astype(jnp.float32)

    if gan_mode == "lsgan":
        # nn.MSELoss with constant target t: (x - t)^2
        if target_val == 0.0:
            per = x * x
        else:
            d = x - jnp.float32(target_val)
            per = d * d
    elif gan_mode == "vanilla":
        # nn.BCEWithLogitsLoss with constant target t (stable form):
        #   max(x, 0) - x*t + log(1 + exp(-|x|))
        per = jnp.maximum(x, 0.0) + jnp.log1p(jnp.exp(-jnp.abs(x)))
        if target_val != 0.0:
            per = per - x * jnp.float32(target_val)
    else:
        raise ValueError(f"unsupported gan_mode {gan_mode!r}")

    if needs_mask:
        # Zero out lane padding of the last row and any garbage rows that
        # Pallas pads in for a ragged last block. jnp.where (select, not
        # multiply) so NaN/Inf garbage cannot leak into the sum.
        row_ids = jax.lax.broadcasted_iota(jnp.int32, per.shape, 0)
        lane_ids = jax.lax.broadcasted_iota(jnp.int32, per.shape, 1)
        global_idx = (i * rows_per_tile + row_ids) * LANE + lane_ids
        per = jnp.where(global_idx < n_valid, per, 0.0)

    # Fold the (rows_per_tile, 128) tile onto one (8, 128) vreg of partial
    # sums (pure vreg adds); the cross-lane reduce is deferred to the epilogue.
    acc_ref[...] += jnp.sum(per.reshape(-1, 8, LANE), axis=0)

    @pl.when(i == pl.num_programs(0) - 1)
    def _():
        o_ref[0, 0] = jnp.sum(acc_ref[...]) / jnp.float32(n_valid)


def gan_loss(prediction, target_is_real, gan_mode="lsgan",
             max_rows_per_tile=MAX_ROWS_PER_TILE):
    """Pallas equivalent of GANLoss(gan_mode)(prediction, target_is_real)."""
    target_val = 1.0 if target_is_real else 0.0

    # Keep the input dtype (cast happens in-kernel); only pad to the 128-lane
    # width so the flat array reshapes to (rows, 128).
    x = prediction.reshape(-1)
    n = x.shape[0]
    rem = n % LANE
    if rem:
        x = jnp.pad(x, (0, LANE - rem))
    rows = x.shape[0] // LANE
    x2d = x.reshape(rows, LANE)

    # Rows per tile: multiple of 8 (sublane), capped at max_rows_per_tile.
    rows_per_tile = min(max_rows_per_tile, max(8, ((rows + 7) // 8) * 8))
    grid = (pl.cdiv(rows, rows_per_tile),)

    # Masking is only needed if the flat size does not tile exactly.
    needs_mask = (rem != 0) or (rows % rows_per_tile != 0)

    kernel = functools.partial(
        _gan_loss_kernel,
        target_val=target_val,
        gan_mode=gan_mode,
        n_valid=n,
        rows_per_tile=rows_per_tile,
        needs_mask=needs_mask,
    )

    out = pl.pallas_call(
        kernel,
        out_shape=jax.ShapeDtypeStruct((1, 1), jnp.float32),
        grid_spec=pltpu.PrefetchScalarGridSpec(
            num_scalar_prefetch=0,
            grid=grid,
            in_specs=[
                pl.BlockSpec((rows_per_tile, LANE), lambda i: (i, 0)),
            ],
            out_specs=pl.BlockSpec(memory_space=pltpu.MemorySpace.SMEM),
            scratch_shapes=[pltpu.VMEM((8, LANE), jnp.float32)],
        ),
        compiler_params=pltpu.CompilerParams(
            dimension_semantics=("arbitrary",)
        ),
    )(x2d)

    return out[0, 0]


def _ref_loss(pred, target_is_real, gan_mode):
    t = 1.0 if target_is_real else 0.0
    p = pred.astype(jnp.float32)
    if gan_mode == "lsgan":
        return jnp.mean((p - t) ** 2)
    # vanilla = BCEWithLogitsLoss (stable form)
    return jnp.mean(jnp.maximum(p, 0.0) - p * t + jnp.log1p(jnp.exp(-jnp.abs(p))))


if __name__ == "__main__":
    key = jax.random.PRNGKey(0)
    k1, k2 = jax.random.split(key)

    # typical PatchGAN discriminator output (NCHW in PyTorch terms)
    pred = jax.random.normal(k1, (2, 4, 16, 16), dtype=jnp.float32)
    # ragged size (not a multiple of 128) to exercise the in-kernel mask
    pred_ragged = jax.random.normal(k2, (2, 3, 33, 33), dtype=jnp.float32)

    outs = []
    refs = []

    # lsgan, real / fake
    outs.append(gan_loss(pred, True, gan_mode="lsgan"))
    refs.append(_ref_loss(pred, True, "lsgan"))
    outs.append(gan_loss(pred, False, gan_mode="lsgan"))
    refs.append(_ref_loss(pred, False, "lsgan"))

    # vanilla (BCEWithLogits), real / fake
    outs.append(gan_loss(pred, True, gan_mode="vanilla"))
    refs.append(_ref_loss(pred, True, "vanilla"))
    outs.append(gan_loss(pred, False, gan_mode="vanilla"))
    refs.append(_ref_loss(pred, False, "vanilla"))

    # ragged input (exercises the validity mask), lsgan real
    outs.append(gan_loss(pred_ragged, True, gan_mode="lsgan"))
    refs.append(_ref_loss(pred_ragged, True, "lsgan"))

    # force multiple grid steps (small tiles) to exercise the accumulator path
    outs.append(gan_loss(pred, True, gan_mode="lsgan", max_rows_per_tile=8))
    refs.append(_ref_loss(pred, True, "lsgan"))

    outs = jax.block_until_ready(tuple(outs))

    for got, want in zip(outs, refs):
        assert jnp.allclose(got, want, rtol=1e-5, atol=1e-5), (got, want)

    print("KERNEL_OK")
</pallas_src>

<mosaic_0001>
module attributes {stable_mosaic.version = 11 : i64} {
  func.func @_gan_loss_kernel(%arg0: i32, %arg1: memref<16x128xf32, #tpu.memory_space<vmem>>, %arg2: memref<1x1xf32, #tpu.memory_space<smem>>, %arg3: memref<8x128xf32, #tpu.memory_space<vmem>>) attributes {dimension_semantics = [#tpu.dimension_semantics<arbitrary>], iteration_bounds = array<i64: 1>, scalar_prefetch = 0 : i64, scratch_operands = 1 : i64, tpu.core_type = #tpu.core_type<tc>, window_params = [{transform_indices = @transform_0, window_bounds = array<i64: 16, 128>}, {transform_indices = @transform_1, window_bounds = array<i64: 1, 1>}]} {
    %c0_i32 = arith.constant 0 : i32
    %0 = arith.cmpi eq, %arg0, %c0_i32 : i32
    %1 = arith.extui %0 : i1 to i32
    %c0_i32_0 = arith.constant 0 : i32
    %2 = arith.cmpi ne, %1, %c0_i32_0 : i32
    scf.if %2 {
      %cst_9 = arith.constant 0.000000e+00 : f32
      %15 = vector.broadcast %cst_9 : f32 to vector<8x128xf32>
      %c0_10 = arith.constant 0 : index
      %c0_11 = arith.constant 0 : index
      %16 = vector.load %arg3[%c0_10, %c0_11] : memref<8x128xf32, #tpu.memory_space<vmem>>, vector<8x128xf32>
      tpu.vector_store %arg3[%c0_10, %c0_11], %15 {strides = array<i32>} : memref<8x128xf32, #tpu.memory_space<vmem>>, vector<8x128xf32>,
    } else {
    }
    %c0 = arith.constant 0 : index
    %c0_1 = arith.constant 0 : index
    %3 = vector.load %arg1[%c0, %c0_1] : memref<16x128xf32, #tpu.memory_space<vmem>>, vector<16x128xf32>
    %cst = arith.constant 1.000000e+00 : f32
    %4 = vector.broadcast %cst : f32 to vector<16x128xf32>
    %5 = arith.subf %3, %4 : vector<16x128xf32>
    %6 = arith.mulf %5, %5 : vector<16x128xf32>
    %c0_2 = arith.constant 0 : index
    %c0_3 = arith.constant 0 : index
    %7 = vector.load %arg3[%c0_2, %c0_3] : memref<8x128xf32, #tpu.memory_space<vmem>>, vector<8x128xf32>
    %8 = vector.shape_cast %6 : vector<16x128xf32> to vector<2x8x128xf32>
    %cst_4 = arith.constant dense<0.000000e+00> : vector<8x128xf32>
    %9 = vector.multi_reduction <add>, %8, %cst_4 [0] : vector<2x8x128xf32> to vector<8x128xf32>
    %10 = arith.addf %7, %9 : vector<8x128xf32>
    %c0_5 = arith.constant 0 : index
    %c0_6 = arith.constant 0 : index
    %11 = vector.load %arg3[%c0_5, %c0_6] : memref<8x128xf32, #tpu.memory_space<vmem>>, vector<8x128xf32>
    tpu.vector_store %arg3[%c0_5, %c0_6], %10 {strides = array<i32>} : memref<8x128xf32, #tpu.memory_space<vmem>>, vector<8x128xf32>,
    %c0_i32_7 = arith.constant 0 : i32
    %12 = arith.cmpi eq, %arg0, %c0_i32_7 : i32
    %13 = arith.extui %12 : i1 to i32
    %c0_i32_8 = arith.constant 0 : i32
    %14 = arith.cmpi ne, %13, %c0_i32_8 : i32
    scf.if %14 {
      %c0_9 = arith.constant 0 : index
      %c0_10 = arith.constant 0 : index
      %15 = vector.load %arg3[%c0_9, %c0_10] : memref<8x128xf32, #tpu.memory_space<vmem>>, vector<8x128xf32>
      %16 = vector.shape_cast %15 : vector<8x128xf32> to vector<1x8x128xf32>
      %cst_11 = arith.constant dense<0.000000e+00> : vector<1xf32>
      %17 = vector.multi_reduction <add>, %16, %cst_11 [1, 2] : vector<1x8x128xf32> to vector<1xf32>
      %18 = vector.shape_cast %17 : vector<1xf32> to vector<1x1x1xf32>
      %19 = vector.extract %18[0, 0, 0] : f32 from vector<1x1x1xf32>
      %cst_12 = arith.constant 2.048000e+03 : f32
      %20 = arith.divf %19, %cst_12 : f32
      %c0_13 = arith.constant 0 : index
      %c0_14 = arith.constant 0 : index
      %21 = memref.load %arg2[%c0_13, %c0_14] : memref<1x1xf32, #tpu.memory_space<smem>>
      memref.store %20, %arg2[%c0_13, %c0_14] : memref<1x1xf32, #tpu.memory_space<smem>>
    } else {
    }
    return
  }
  func.func @transform_0(%arg0: i32) -> (i32, i32) {
    %c0_i32 = arith.constant 0 : i32
    %c0_i32_0 = arith.constant 0 : i32
    return %arg0, %c0_i32 : i32, i32
  }
  func.func @transform_1(%arg0: i32) -> (i32, i32) {
    %c0_i32 = arith.constant 0 : i32
    %c0_i32_0 = arith.constant 0 : i32
    %c0_i32_1 = arith.constant 0 : i32
    return %c0_i32, %c0_i32_0 : i32, i32
  }
}

</mosaic_0001>

<llo_original>
// kernel: tpu_custom_call.1
$region0: #{tpu_custom_call.1}
  #allocation0 [shape = 'u32[]', space=smem, size = 0x4, offset = 0x4, fixed_abs, tag = 'smem constant byte address 0x4 - core index']
  #allocation1 [shape = 'u32[144,128]{1,0:T(1,128)}', space=vmem, size = 0x12000, scoped, tag = 'internal scratch']
  #allocation2 [shape = 'f32[8,128]{1,0:T(8,128)}', space=vmem, size = 0x1000, scoped, tag = 'scratch operand']
  %s0 = inlined_call_operand.hbm [shape: f32[16,128], index: 0, kind: input, shape index: {}]
  %s1 = inlined_call_operand.hbm [shape: f32[1,1], index: 1, kind: output, shape index: {}]
  %s2 = sld [smem:[#allocation0]]
  $region26: #{tpu_custom_call.1} parent=0
    _
  %s4 = ssub.s32 1, %s2
  %s5 = scalar_select 0, %s4, %s2
  $region1: #{tpu_custom_call.1} parent=0
    #allocation3 [shape = 'u8[8192]{0}', space=vmem, size = 0x2000, scoped, tag = 'input window, operand 0, single buffered']
    #allocation4 [shape = 's32[1]{0}', space=sflag, size = 0x4, scoped, tag = 'scoped memory for tpu_custom_call.1']
    #allocation5 [shape = 's32[1]{0}', space=sflag, size = 0x4, scoped, tag = 'scoped memory for tpu_custom_call.1']
    #allocation6 [shape = 'u8[512]{0}', space=smem, size = 0x200, scoped, tag = 'output window, operand 0, single buffered']
    %6 = vsyncpa [#allocation4], 0
    %7 = vsyncpa [#allocation5], 0
    // Predicated region
    $region2: #{tpu_custom_call.1} parent=1 // pred_check
      _
    $region3: #{tpu_custom_call.1} parent=1 // pred_check_branch
      %9 = sbr.rel (0) target = $region5
    $region4: #{tpu_custom_call.1} parent=1 // pred_region
      %s11 = ssub.s32 256, 256
      %12 = vsyncadd [#allocation4], %s11
      %s13 = sshll.u32 [#allocation3], 4
      %s14 = int_to_ptr.vmem [resolvable:$true] %s13
      %19 = dma.hbm_to_vmem [thread:$0]  %s0, 256, %s14, [#allocation4], 128, 128, 8
    $region5: #{tpu_custom_call.1} parent=1 // pred_fallthru
      _
    // Predicated region
    $region6: #{tpu_custom_call.1} parent=1 // pred_check
      _
    $region7: #{tpu_custom_call.1} parent=1 // pred_check_branch
      %21 = sbr.rel (0) target = $region9
    $region8: #{tpu_custom_call.1} parent=1 // pred_region
      %22 = dma.done [#allocation4], 256
    $region9: #{tpu_custom_call.1} parent=1 // pred_fallthru
      _
    %p23 = scmp.eq.s32.totalorder 0, 0
    // Predicated region
    $region10: #{tpu_custom_call.1} parent=1 // pred_check
      %p24 = pneg %p23
    $region11: #{tpu_custom_call.1} parent=1 // pred_check_branch
      %26 = sbr.rel (%p24) target = $region13
    $region12: #{tpu_custom_call.1} parent=1 // pred_region
      %27 = vst [vmem:[#allocation2] sm:$0xff] 0.0
    $region13: #{tpu_custom_call.1} parent=1 // pred_fallthru
      _
    %v28 = vld [vmem:[#allocation3] sm:$0xff]
    %v29 = vld [vmem:[#allocation3 + $0x8] sm:$0xff]
    %v30 = vsub.f32 %v28, 1.0
    %v31 = vsub.f32 %v29, 1.0
    %v32 = vmul.f32 %v30, %v30
    %v33 = vmul.f32 %v31, %v31
    %v34 = vld [vmem:[#allocation2] sm:$0xff]
    %v35 = vadd.f32 %v32, %v33
    %v36 = vadd.f32 %v34, %v35
    %37 = vst [vmem:[#allocation2] sm:$0xff] %v36
    // Predicated region
    $region14: #{tpu_custom_call.1} parent=1 // pred_check
      %p38 = pneg %p23
    $region15: #{tpu_custom_call.1} parent=1 // pred_check_branch
      %40 = sbr.rel (%p38) target = $region17
    $region16: #{tpu_custom_call.1} parent=1 // pred_region
      %v41 = vld [vmem:[#allocation2] sm:$0xff]
      %42 = vadd.xlane.f32.xlu0 %v41
      %v43 = vpop.xlane.xlu0 %42
      %v44 = vrot.slane %v43, 4
      %v45 = vadd.f32 %v43, %v44
      %v46 = vrot.slane %v45, 2
      %v47 = vadd.f32 %v45, %v46
      %v48 = vrot.slane %v47, 1
      %v49 = vadd.f32 %v47, %v48
      %s50 = vtos %v49
      %v51 = vrcp.pop 2048.0
      %s52 = vtos %v51
      %s53 = smul.f32 %s50, %s52
      %s54 = scalar_lea.smem [#allocation6], 0
      %55 = sst [smem:[%s54]] %s53
    $region17: #{tpu_custom_call.1} parent=1 // pred_fallthru
      _
    // Predicated region
    $region18: #{tpu_custom_call.1} parent=1 // pred_check
      _
    $region19: #{tpu_custom_call.1} parent=1 // pred_check_branch
      %57 = sbr.rel (0) target = $region21
    $region20: #{tpu_custom_call.1} parent=1 // pred_region
      %s59 = ssub.s32 16, 16
      %60 = vsyncadd [#allocation5], %s59
      %63 = dma.smem_to_hbm [#allocation6], 16, %s1, [#allocation5]
    $region21: #{tpu_custom_call.1} parent=1 // pred_fallthru
      _
    // Predicated region
    $region22: #{tpu_custom_call.1} parent=1 // pred_check
      _
    $region23: #{tpu_custom_call.1} parent=1 // pred_check_branch
      %65 = sbr.rel (0) target = $region25
    $region24: #{tpu_custom_call.1} parent=1 // pred_region
      %66 = dma.done [#allocation5], 16
    $region25: #{tpu_custom_call.1} parent=1 // pred_fallthru
      _
    %67 = sfence
    %68 = vsyncpa [#allocation4], 1
    %69 = vsyncpa [#allocation5], 1

</llo_original>
